<compile_context>
chip_gen: v5e
topology: v5e:2x2
jax: 0.10.0
libtpu: 0.0.40
codegen_flags: <defaults>
</compile_context>

<pallas_src>
import math
import functools

import jax
import jax.numpy as jnp
from jax.experimental import pallas as pl
from jax.experimental.pallas import tpu as pltpu


def _build_pe_table(d_model: int, max_len: int) -> jnp.ndarray:
    """Deterministic sinusoidal PE table, same math as the PyTorch __init__."""
    position = jnp.arange(0, max_len, dtype=jnp.float32)[:, None]          # (L, 1)
    div_term = jnp.exp(
        jnp.arange(0, d_model, 2, dtype=jnp.float32) * (-math.log(10000.0) / d_model)
    )                                                                       # (D/2,)
    pe = jnp.zeros((max_len, d_model), dtype=jnp.float32)
    pe = pe.at[:, 0::2].set(jnp.sin(position * div_term))
    pe = pe.at[:, 1::2].set(jnp.cos(position * div_term))
    return pe                                                               # (L, D)


def _pe_add_kernel(x_ref, pe_ref, o_ref):
    # x_ref: (TS, D2) view (batch dim squeezed), pe_ref: (TS, D2)
    o_ref[...] = (x_ref[...] + pe_ref[...]).astype(o_ref.dtype)


def _pe_add_dropout_kernel(x_ref, pe_ref, bits_ref, o_ref, *, keep_threshold, inv_keep):
    y = x_ref[...] + pe_ref[...]
    # Integer-threshold keep decision: keep iff uniform-u32 < keep_prob * 2^32.
    thr = jnp.array(keep_threshold, dtype=jnp.uint32)
    keep = bits_ref[...] < thr
    o_ref[...] = jnp.where(keep, y * inv_keep, 0.0).astype(o_ref.dtype)


def positional_encoding_forward(x, pe_table, *, p=0.1, training=False, seed=0):
    """x: (B, S, D).  Returns dropout(x + pe[:S]) like the nn.Module forward."""
    B, S, D = x.shape
    pe_slice = pe_table[:S].astype(x.dtype)                                 # (S, D)

    # ---- lane-density fold: make innermost dim a multiple of 128 if possible ----
    if D % 128 == 0:
        S2, D2 = S, D
    else:
        fold = 128 // math.gcd(D, 128)
        if S % fold == 0:
            S2, D2 = S // fold, D * fold
        else:
            S2, D2 = S, D   # fall back: masked partial stores, still correct

    x2 = x.reshape(B, S2, D2)
    pe2 = pe_slice.reshape(S2, D2)

    # ---- choose sequence tile: ~2 MiB per x tile, sublane (8) aligned ----
    bytes_per = jnp.dtype(x.dtype).itemsize
    target_bytes = 2 * 1024 * 1024
    ts = max(1, target_bytes // (D2 * bytes_per))
    if ts >= S2:
        ts = S2                                   # full extent is always legal
    else:
        ts = min(S2, max(8, (ts // 8) * 8))       # multiple of 8 rows

    grid = (B, pl.cdiv(S2, ts))

    x_spec = pl.BlockSpec((None, ts, D2), lambda b, s: (b, s, 0))
    pe_spec = pl.BlockSpec((ts, D2), lambda b, s: (s, 0))
    bits_spec = pl.BlockSpec((None, ts, D2), lambda b, s: (b, s, 0))
    out_spec = pl.BlockSpec((None, ts, D2), lambda b, s: (b, s, 0))

    compiler_params = pltpu.CompilerParams(
        dimension_semantics=("parallel", "parallel"),   # megacore-shardable on v7x
        vmem_limit_bytes=32 * 1024 * 1024,
    )

    use_dropout = training and p > 0.0
    if use_dropout:
        keep_prob = 1.0 - p
        keep_threshold = min(int(round(keep_prob * (1 << 32))), (1 << 32) - 1)
        # TODO(synk): on real TPU the on-chip PRNG (pltpu.prng_seed/prng_random_bits)
        # would avoid this extra HBM read of random bits, but it has no interpret-mode
        # lowering, so bits are generated wrapper-side for portability.  Caller should
        # fold a training-step counter into `seed` to vary masks across steps.
        key = jax.random.PRNGKey(seed)
        bits = jax.random.bits(key, shape=(B, S2, D2), dtype=jnp.uint32)
        kernel = functools.partial(
            _pe_add_dropout_kernel,
            keep_threshold=keep_threshold,
            inv_keep=float(1.0 / keep_prob),
        )
        in_specs = [x_spec, pe_spec, bits_spec]
        args = (x2, pe2, bits)
    else:
        kernel = _pe_add_kernel
        in_specs = [x_spec, pe_spec]
        args = (x2, pe2)

    out2 = pl.pallas_call(
        kernel,
        out_shape=jax.ShapeDtypeStruct((B, S2, D2), x.dtype),
        grid=grid,
        in_specs=in_specs,
        out_specs=out_spec,
        input_output_aliases={0: 0},   # output reuses x's buffer (elementwise, same shape/dtype)
        compiler_params=compiler_params,
    )(*args)

    return out2.reshape(B, S, D)


if __name__ == "__main__":
    d_model = 32
    max_len = 5000
    batch, seq = 2, 8
    p = 0.1

    key = jax.random.PRNGKey(0)
    x = jax.random.normal(key, (batch, seq, d_model), dtype=jnp.float32)

    pe_table = _build_pe_table(d_model, max_len)

    # Eval-mode forward (dropout = identity): must match x + pe exactly.
    out_eval = positional_encoding_forward(x, pe_table, p=p, training=False)
    out_eval = jax.block_until_ready(out_eval)
    ref = x + pe_table[:seq][None, :, :]
    assert jnp.allclose(out_eval, ref, atol=1e-6), "eval-mode mismatch"

    # Train-mode forward (inverted dropout): every element is either 0 or (x+pe)/keep_prob.
    out_train = positional_encoding_forward(x, pe_table, p=p, training=True, seed=42)
    out_train = jax.block_until_ready(out_train)
    assert out_train.shape == x.shape
    scaled = ref / (1.0 - p)
    ok = jnp.isclose(out_train, 0.0, atol=1e-6) | jnp.isclose(out_train, scaled, atol=1e-5)
    assert bool(jnp.all(ok)), "train-mode values not in {0, (x+pe)/keep_prob}"

    print("KERNEL_OK")
</pallas_src>

<mosaic_0001>
module attributes {stable_mosaic.version = 11 : i64} {
  func.func @_pe_add_kernel(%arg0: i32, %arg1: i32, %arg2: memref<1x2x128xf32, #tpu.memory_space<vmem>>, %arg3: memref<2x128xf32, #tpu.memory_space<vmem>>, %arg4: memref<1x2x128xf32, #tpu.memory_space<vmem>>) attributes {dimension_semantics = [#tpu.dimension_semantics<parallel>, #tpu.dimension_semantics<parallel>], iteration_bounds = array<i64: 2, 1>, scalar_prefetch = 0 : i64, scratch_operands = 0 : i64, tpu.core_type = #tpu.core_type<tc>, window_params = [{transform_indices = @transform_0, window_bounds = array<i64: 1, 2, 128>}, {transform_indices = @transform_1, window_bounds = array<i64: 2, 128>}, {transform_indices = @transform_2, window_bounds = array<i64: 1, 2, 128>}]} {
    %c0 = arith.constant 0 : index
    %c0_0 = arith.constant 0 : index
    %c0_1 = arith.constant 0 : index
    %0 = vector.load %arg2[%c0, %c0_0, %c0_1] : memref<1x2x128xf32, #tpu.memory_space<vmem>>, vector<1x2x128xf32>
    %1 = vector.shape_cast %0 : vector<1x2x128xf32> to vector<2x128xf32>
    %c0_2 = arith.constant 0 : index
    %c0_3 = arith.constant 0 : index
    %2 = vector.load %arg3[%c0_2, %c0_3] : memref<2x128xf32, #tpu.memory_space<vmem>>, vector<2x128xf32>
    %3 = arith.addf %1, %2 : vector<2x128xf32>
    %c0_4 = arith.constant 0 : index
    %c0_5 = arith.constant 0 : index
    %c0_6 = arith.constant 0 : index
    %4 = vector.load %arg4[%c0_4, %c0_5, %c0_6] : memref<1x2x128xf32, #tpu.memory_space<vmem>>, vector<1x2x128xf32>
    %5 = vector.shape_cast %4 : vector<1x2x128xf32> to vector<2x128xf32>
    %6 = vector.shape_cast %3 : vector<2x128xf32> to vector<1x2x128xf32>
    tpu.vector_store %arg4[%c0_4, %c0_5, %c0_6], %6 {strides = array<i32>} : memref<1x2x128xf32, #tpu.memory_space<vmem>>, vector<1x2x128xf32>,
    return
  }
  func.func @transform_0(%arg0: i32, %arg1: i32) -> (i32, i32, i32) {
    %c0_i32 = arith.constant 0 : i32
    %c0_i32_0 = arith.constant 0 : i32
    return %arg0, %arg1, %c0_i32 : i32, i32, i32
  }
  func.func @transform_1(%arg0: i32, %arg1: i32) -> (i32, i32) {
    %c0_i32 = arith.constant 0 : i32
    %c0_i32_0 = arith.constant 0 : i32
    return %arg1, %c0_i32 : i32, i32
  }
  func.func @transform_2(%arg0: i32, %arg1: i32) -> (i32, i32, i32) {
    %c0_i32 = arith.constant 0 : i32
    %c0_i32_0 = arith.constant 0 : i32
    return %arg0, %arg1, %c0_i32 : i32, i32, i32
  }
}

</mosaic_0001>

<llo_original>
// kernel: tpu_custom_call.1
$region0: #{tpu_custom_call.1}
  #allocation0 [shape = 'u32[]', space=smem, size = 0x4, offset = 0x4, fixed_abs, tag = 'smem constant byte address 0x4 - core index']
  #allocation1 [shape = 'u32[72,128]{1,0:T(1,128)}', space=vmem, size = 0x9000, scoped, tag = 'internal scratch']
  %s0 = inlined_call_operand.hbm [shape: f32[2,2,128], index: 0, kind: input, shape index: {}, may-alias: {0,2}]
  %s1 = inlined_call_operand.vmem [shape: f32[2,128], index: 1, kind: input, shape index: {}]
  %s2 = inlined_call_operand.hbm [shape: f32[2,2,128], index: 2, kind: output, shape index: {}, may-alias: {0,2}]
  %s3 = sld [smem:[#allocation0]]
  $region45: #{tpu_custom_call.1} parent=0
    _
  %s5 = ssub.s32 1, %s3
  %s6 = scalar_select 0, %s5, %s3
  $region1: #{tpu_custom_call.1} parent=0
    #allocation2 [shape = 'u8[2048]{0}', space=vmem, size = 0x800, scoped, tag = 'input window, operand 0']
    #allocation3 [shape = 's32[2]{0}', space=sflag, size = 0x8, scoped, tag = 'scoped memory for tpu_custom_call.1']
    #allocation4 [shape = 's32[2]{0}', space=sflag, size = 0x8, scoped, tag = 'scoped memory for tpu_custom_call.1']
    #allocation5 [shape = 'u8[2048]{0}', space=vmem, size = 0x800, scoped, tag = 'output window, operand 0']
    %7 = vsyncpa [#allocation3], 0
    %s8 = scalar_lea.sflag [#allocation3], 1
    %9 = vsyncpa %s8, 0
    %10 = vsyncpa [#allocation4], 0
    %s11 = scalar_lea.sflag [#allocation4], 1
    %12 = vsyncpa %s11, 0
    loop: start=0, step=1, limit=4
    $region2: #{tpu_custom_call.1} parent=1 // loop_pre_header
      _
    $region3: #{tpu_custom_call.1} parent=1 // loop_header
      %s14 = sphi 0, %s18
      %p15 = scmp.ge.s32.totalorder %s14, 4
      %s21 = sphi 0, %s33
      %s22 = sphi 0, %s29
      %s23 = sphi 0, %s21
      %s24 = sphi 0, %s22
      %s25 = sphi 0, %s23
      %s26 = sphi 0, %s24
      %s38 = sphi 0, %s40
      %s41 = sphi 0, %s38
      %s42 = sphi 0, %s41
      %s58 = sphi 0, %s42
      %s64 = sphi 0, %s66
      %s67 = sphi 0, %s64
      %s68 = sphi 0, %s67
      %s84 = sphi 0, %s68
      %s92 = sphi 0, %s94
      %s95 = sphi 0, %s92
      %s96 = sphi 0, %s95
      %s112 = sphi 0, %s96
    $region4: #{tpu_custom_call.1} parent=1 // loop_header_branch
      %17 = sbr.rel (%p15) target = $region8
    $region5: #{tpu_custom_call.1} parent=1 // loop_body
      %s19 = ssub.s32 %s14, 1
      %s20 = ssub.s32 %s14, 2
      %s27 = sadd.s32 1, %s22
      %p28 = scmp.ge.s32.totalorder %s27, 1
      %s29 = scalar_select %p28, 0, %s27
      %s30 = sadd.s32 1, %s21
      %s31 = scalar_select %p28, %s30, %s21
      %p32 = scmp.ge.s32.totalorder %s31, 2
      %s33 = scalar_select %p32, 0, %s31
      %s34 = ssub.s32 %s21, %s33
      %s35 = ssub.s32 %s22, %s29
      %s36 = sor.u32 %s34, %s35
      %p37 = scmp.eq.s32.totalorder %s36, 0
      %s39 = sadd.s32 %s38, 1
      %s40 = scalar_select %p37, %s38, %s39
      %p43 = pneg %p37
      %p44 = scmp.eq.s32.totalorder %s14, 1
      %p45 = por %p43, %p44
      %p46 = scmp.ne.s32.totalorder %s38, %s41
      %p47 = scmp.eq.s32.totalorder %s14, 0
      %p48 = por %p46, %p47
      %p49 = scmp.ne.s32.totalorder %s38, %s41
      %p50 = scmp.eq.s32.totalorder %s19, 1
      %p51 = por %p49, %p50
      %p52 = scmp.ne.s32.totalorder %s41, %s42
      %p53 = scmp.eq.s32.totalorder %s19, 0
      %p54 = por %p52, %p53
      %p55 = scmp.ne.s32.totalorder %s41, %s42
      %p56 = scmp.eq.s32.totalorder %s20, 1
      %p57 = por %p55, %p56
      %p59 = scmp.ne.s32.totalorder %s42, %s58
      %p60 = scmp.eq.s32.totalorder %s20, 0
      %p61 = por %p59, %p60
      %s62 = ssub.s32 %s22, %s29
      %p63 = scmp.eq.s32.totalorder %s62, 0
      %s65 = sadd.s32 %s64, 1
      %s66 = scalar_select %p63, %s64, %s65
      %p69 = pneg %p63
      %p70 = scmp.eq.s32.totalorder %s14, 1
      %p71 = por %p69, %p70
      %p72 = scmp.ne.s32.totalorder %s64, %s67
      %p73 = scmp.eq.s32.totalorder %s14, 0
      %p74 = por %p72, %p73
      %p75 = scmp.ne.s32.totalorder %s64, %s67
      %p76 = scmp.eq.s32.totalorder %s19, 1
      %p77 = por %p75, %p76
      %p78 = scmp.ne.s32.totalorder %s67, %s68
      %p79 = scmp.eq.s32.totalorder %s19, 0
      %p80 = por %p78, %p79
      %p81 = scmp.ne.s32.totalorder %s67, %s68
      %p82 = scmp.eq.s32.totalorder %s20, 1
      %p83 = por %p81, %p82
      %p85 = scmp.ne.s32.totalorder %s68, %s84
      %p86 = scmp.eq.s32.totalorder %s20, 0
      %p87 = por %p85, %p86
      %s88 = ssub.s32 %s21, %s33
      %s89 = ssub.s32 %s22, %s29
      %s90 = sor.u32 %s88, %s89
      %p91 = scmp.eq.s32.totalorder %s90, 0
      %s93 = sadd.s32 %s92, 1
      %s94 = scalar_select %p91, %s92, %s93
      %p97 = pneg %p91
      %p98 = scmp.eq.s32.totalorder %s14, 1
      %p99 = por %p97, %p98
      %p100 = scmp.ne.s32.totalorder %s92, %s95
      %p101 = scmp.eq.s32.totalorder %s14, 0
      %p102 = por %p100, %p101
      %p103 = scmp.ne.s32.totalorder %s92, %s95
      %p104 = scmp.eq.s32.totalorder %s19, 1
      %p105 = por %p103, %p104
      %p106 = scmp.ne.s32.totalorder %s95, %s96
      %p107 = scmp.eq.s32.totalorder %s19, 0
      %p108 = por %p106, %p107
      %p109 = scmp.ne.s32.totalorder %s95, %s96
      %p110 = scmp.eq.s32.totalorder %s20, 1
      %p111 = por %p109, %p110
      %p113 = scmp.ne.s32.totalorder %s96, %s112
      %p114 = scmp.eq.s32.totalorder %s20, 0
      %p115 = por %p113, %p114
      %p116 = scmp.le.s32.totalorder 1, %s14
      %p117 = scmp.lt.s32.totalorder %s14, 3
      %p118 = pnand %p116, %p117
      %p119 = pneg %p118
      // Predicated region
      $region9: #{tpu_custom_call.1} parent=5 // pred_check
        _
      $region10: #{tpu_custom_call.1} parent=5 // pred_check_branch
        %121 = sbr.rel (%p118) target = $region12
      $region11: #{tpu_custom_call.1} parent=5 // pred_region
        %s122 = ssub.s32 %s14, 1
        // Predicated region
        $region13: #{tpu_custom_call.1} parent=11 // pred_check
          %p123 = pneg %p80
        $region14: #{tpu_custom_call.1} parent=11 // pred_check_branch
          %125 = sbr.rel (%p123) target = $region16
        $region15: #{tpu_custom_call.1} parent=11 // pred_region
          %p126 = scmp.lt.s32.totalorder %s24, 0
          %s127 = scalar_select %p126, %s24, 0
          %s128 = smul.addr %s127, 2
          %s129 = scalar_lea.vmem %s1, %s128
        $region16: #{tpu_custom_call.1} parent=11 // pred_fallthru
          _
      $region12: #{tpu_custom_call.1} parent=5 // pred_fallthru
        _
      %p130 = scmp.lt.s32.totalorder %s14, 2
      // Predicated region
      $region17: #{tpu_custom_call.1} parent=5 // pred_check
        %p131 = pneg %p130
      $region18: #{tpu_custom_call.1} parent=5 // pred_check_branch
        %133 = sbr.rel (%p131) target = $region20
      $region19: #{tpu_custom_call.1} parent=5 // pred_region
        // Predicated region
        $region21: #{tpu_custom_call.1} parent=19 // pred_check
          %p134 = pneg %p48
        $region22: #{tpu_custom_call.1} parent=19 // pred_check_branch
          %136 = sbr.rel (%p134) target = $region24
        $region23: #{tpu_custom_call.1} parent=19 // pred_region
          %s137 = sand.u32 %s38, 1
          %s138 = scalar_lea.sflag [#allocation3], %s137
          %s139 = sand.u32 %s38, 1
          %s140 = smul.addr %s139, 2
          %s141 = scalar_lea.vmem [#allocation2], %s140
          %143 = vsyncadd %s138, 0
          %s144 = sadd.s32 %s22, %s21
          %s145 = smul.addr %s144, 2
          %s146 = scalar_lea.hbm %s0, %s145
          %s148 = sshll.u32 %s146, 4
          %s149 = int_to_ptr.hbm [resolvable:$true] %s148
          %s150 = sshll.u32 %s141, 4
          %s151 = int_to_ptr.vmem [resolvable:$true] %s150
          %153 = dma.hbm_to_vmem [thread:$0]  %s149, 32, %s151, %s138
        $region24: #{tpu_custom_call.1} parent=19 // pred_fallthru
          _
      $region20: #{tpu_custom_call.1} parent=5 // pred_fallthru
        _
      %p154 = scmp.le.s32.totalorder 1, %s14
      %p155 = scmp.lt.s32.totalorder %s14, 3
      %p156 = pnand %p154, %p155
      %p157 = pneg %p156
      // Predicated region
      $region25: #{tpu_custom_call.1} parent=5 // pred_check
        _
      $region26: #{tpu_custom_call.1} parent=5 // pred_check_branch
        %159 = sbr.rel (%p156) target = $region28
      $region27: #{tpu_custom_call.1} parent=5 // pred_region
        %s160 = ssub.s32 %s14, 1
        %s161 = sand.u32 %s41, 1
        %s162 = scalar_lea.sflag [#allocation3], %s161
        %s163 = sand.u32 %s41, 1
        %s164 = smul.addr %s163, 2
        %s165 = scalar_lea.vmem [#allocation2], %s164
        // Predicated region
        $region29: #{tpu_custom_call.1} parent=27 // pred_check
          %p166 = pneg %p54
        $region30: #{tpu_custom_call.1} parent=27 // pred_check_branch
          %168 = sbr.rel (%p166) target = $region32
        $region31: #{tpu_custom_call.1} parent=27 // pred_region
          %170 = dma.done %s162, 32
        $region32: #{tpu_custom_call.1} parent=27 // pred_fallthru
          _
        %s171 = sand.u32 %s41, 1
        %s172 = scalar_lea.sflag [#allocation3], %s171
        %s173 = sand.u32 %s41, 1
        %s174 = smul.addr %s173, 2
        %s175 = scalar_lea.vmem [#allocation2], %s174
        %p176 = pneg %p54
        %p177 = pneg %p51
        %p178 = scmp.lt.s32.totalorder %s24, 0
        %s179 = scalar_select %p178, %s24, 0
        %s180 = smul.addr %s179, 2
        %s181 = scalar_lea.vmem %s1, %s180
        %p182 = pneg %p80
        %p183 = pneg %p77
        %p184 = pneg %p108
        %p185 = pneg %p105
        %s186 = sand.u32 %s95, 1
        %s187 = scalar_lea.sflag [#allocation4], %s186
        %s188 = sand.u32 %s95, 1
        %s189 = smul.addr %s188, 2
        %s190 = scalar_lea.vmem [#allocation5], %s189
        %p191 = scmp.lt.s32.totalorder %s24, 0
        %s192 = scalar_select %p191, %s24, 0
        %s193 = smul.addr %s192, 2
        %s194 = scalar_lea.vmem %s1, %s193
        %v195 = vld [vmem:[%s165] sm:$0x3]
        %v196 = vld [vmem:[%s194] sm:$0x3]
        %v197 = vadd.f32 %v195, %v196
        %198 = vst [vmem:[%s190] sm:$0x3] %v197
        %s199 = sand.u32 %s95, 1
        %s200 = scalar_lea.sflag [#allocation4], %s199
        %s201 = sand.u32 %s95, 1
        %s202 = smul.addr %s201, 2
        %s203 = scalar_lea.vmem [#allocation5], %s202
        // Predicated region
        $region33: #{tpu_custom_call.1} parent=27 // pred_check
          %p204 = pneg %p105
        $region34: #{tpu_custom_call.1} parent=27 // pred_check_branch
          %206 = sbr.rel (%p204) target = $region36
        $region35: #{tpu_custom_call.1} parent=27 // pred_region
          %208 = vsyncadd %s200, 0
          %s209 = sadd.s32 %s24, %s23
          %s210 = smul.addr %s209, 2
          %s211 = scalar_lea.hbm %s2, %s210
          %s213 = sshll.u32 %s203, 4
          %s214 = int_to_ptr.vmem [resolvable:$true] %s213
          %s215 = sshll.u32 %s211, 4
          %s216 = int_to_ptr.hbm [resolvable:$true] %s215
          %218 = dma.vmem_to_hbm [thread:$0]  %s214, 32, %s216, %s200
        $region36: #{tpu_custom_call.1} parent=27 // pred_fallthru
          _
      $region28: #{tpu_custom_call.1} parent=5 // pred_fallthru
        _
      %p219 = scmp.le.s32.totalorder 2, %s14
      // Predicated region
      $region37: #{tpu_custom_call.1} parent=5 // pred_check
        %p220 = pneg %p219
      $region38: #{tpu_custom_call.1} parent=5 // pred_check_branch
        %222 = sbr.rel (%p220) target = $region40
      $region39: #{tpu_custom_call.1} parent=5 // pred_region
        %s223 = ssub.s32 %s14, 2
        // Predicated region
        $region41: #{tpu_custom_call.1} parent=39 // pred_check
          %p224 = pneg %p111
        $region42: #{tpu_custom_call.1} parent=39 // pred_check_branch
          %226 = sbr.rel (%p224) target = $region44
        $region43: #{tpu_custom_call.1} parent=39 // pred_region
          %s227 = sand.u32 %s96, 1
          %s228 = scalar_lea.sflag [#allocation4], %s227
          %s229 = sand.u32 %s96, 1
          %s230 = smul.addr %s229, 2
          %s231 = scalar_lea.vmem [#allocation5], %s230
          %233 = dma.done %s228, 32
        $region44: #{tpu_custom_call.1} parent=39 // pred_fallthru
          _
      $region40: #{tpu_custom_call.1} parent=5 // pred_fallthru
        _
    $region6: #{tpu_custom_call.1} parent=1 // loop_footer
      %s18 = sadd.s32 1, %s14
    $region7: #{tpu_custom_call.1} parent=1 // loop_footer_branch
      %13 = sbr.rel target = $region3
    $region8: #{tpu_custom_call.1} parent=1 // loop_exit
      _
    %234 = vsyncpa [#allocation3], 1
    %s235 = scalar_lea.sflag [#allocation3], 1
    %236 = vsyncpa %s235, 1
    %237 = vsyncpa [#allocation4], 1
    %s238 = scalar_lea.sflag [#allocation4], 1
    %239 = vsyncpa %s238, 1

</llo_original>
